<compile_context>
chip_gen: v5e
topology: v5e:2x2
jax: 0.10.0
libtpu: 0.0.40
codegen_flags: <defaults>
</compile_context>

<pallas_src>
import functools

import jax
import jax.numpy as jnp
from jax.experimental import pallas as pl
from jax.experimental.pallas import tpu as pltpu


# ----------------------------- kernels ------------------------------------ #

def _partial_sum_kernel(x_ref, partial_ref):
    """Phase 1: reduce one (br, C) tile to a lane-dense (8, C) f32 partial.

    The tile is viewed as (br//8, 8, C) row-tiles and summed over the leading
    axis -- pure VPU adds of whole vregs, no cross-lane XLU reduce and no
    serialized scalar accumulator chain.  The final cross-lane reduce over
    all partials is done once, outside the kernel.
    """
    x = x_ref[...]
    br, c = x.shape
    partial_ref[...] = jnp.sum(x.reshape(br // 8, 8, c), axis=0,
                               dtype=jnp.float32)


def _subtract_kernel(sum_ref, x_ref, o_ref, *, inv_n):
    """Phase 2: o = x - sum * (1/N); sum is a (1,1) f32 scalar in SMEM."""
    mean = sum_ref[0, 0] * inv_n           # inv_n is a compile-time constant
    o_ref[...] = (x_ref[...].astype(jnp.float32) - mean).astype(o_ref.dtype)


# ----------------------------- planning ------------------------------------ #

_TARGET_BLOCK_BYTES = 4 * 1024 * 1024     # ~4 MiB tiles amortize grid overhead
_VMEM_LIMIT_BYTES = 48 * 1024 * 1024      # fits v7x's 64 MiB/TC with headroom
_MIN_PALLAS_ELEMS = 256 * 1024            # below this, fused XLA wins


def _plan_tiling(size, itemsize, block_bytes):
    """Pick a flat (rows, cols) view + row-block size, or None for fallback.

    Full-width (cols = whole row) blocks keep each tile's HBM traffic fully
    contiguous and collapse the grid to 1-D over rows.
    """
    sublane = max(8, 32 // itemsize)       # native sublane tile per dtype
    for cols in (1024, 512, 256, 128):
        if size % cols:
            continue
        rows = size // cols
        if rows % sublane:
            continue
        max_br = max(sublane, block_bytes // (cols * itemsize))
        if rows <= max_br:
            return rows, cols, rows        # whole array in a single block
        for cand in (8192, 4096, 2048, 1024, 512, 256, 128, 64, 32, 16, 8):
            if cand <= max_br and cand % sublane == 0 and rows % cand == 0:
                return rows, cols, cand
    return None


# ----------------------------- wrapper ------------------------------------ #

def centered_layer(x: jax.Array, *, min_elems=_MIN_PALLAS_ELEMS,
                   block_bytes=_TARGET_BLOCK_BYTES) -> jax.Array:
    """X - X.mean() over ALL elements (exact PyTorch CenteredLayer semantics)."""
    if x.ndim == 0:
        return x - x
    if not jnp.issubdtype(x.dtype, jnp.floating):
        # TODO(synk): integer inputs keep jnp promotion semantics via the
        # XLA fallback (a cast-back-to-int Pallas path would truncate).
        return x - jnp.mean(x)

    size = x.size
    itemsize = jnp.dtype(x.dtype).itemsize
    plan = (_plan_tiling(size, itemsize, block_bytes)
            if size >= max(min_elems, 1) else None)
    if plan is None:
        # Tiny or awkwardly-sized input: let XLA fuse it into one kernel.
        return x - jnp.mean(x)

    rows, cols, br = plan
    n_blocks = rows // br
    x2 = x.reshape(rows, cols)             # layout-agnostic flatten

    cp = pltpu.CompilerParams(dimension_semantics=("parallel",),
                              vmem_limit_bytes=_VMEM_LIMIT_BYTES)

    # Phase 1: per-row-block lane-dense partial sums (megacore-splittable).
    partials = pl.pallas_call(
        _partial_sum_kernel,
        out_shape=jax.ShapeDtypeStruct((8 * n_blocks, cols), jnp.float32),
        grid=(n_blocks,),
        in_specs=[pl.BlockSpec((br, cols), lambda i: (i, 0))],
        out_specs=pl.BlockSpec((8, cols), lambda i: (i, 0)),
        compiler_params=cp,
    )(x2)

    # Single cross-lane tree reduce over the small partial array.
    total = jnp.sum(partials, dtype=jnp.float32).reshape(1, 1)

    # Phase 2: tiled subtract; 1/N scaling folded into the kernel.
    out2 = pl.pallas_call(
        functools.partial(_subtract_kernel, inv_n=1.0 / size),
        out_shape=jax.ShapeDtypeStruct((rows, cols), x2.dtype),
        grid=(n_blocks,),
        in_specs=[pl.BlockSpec(memory_space=pltpu.MemorySpace.SMEM),
                  pl.BlockSpec((br, cols), lambda i: (i, 0))],
        out_specs=pl.BlockSpec((br, cols), lambda i: (i, 0)),
        compiler_params=cp,
    )(total, x2)

    return out2.reshape(x.shape)


# ------------------------------- demo -------------------------------------- #

if __name__ == "__main__":
    key = jax.random.PRNGKey(0)
    k1, k2, k3 = jax.random.split(key, 3)

    # (1) Multi-block Pallas path: force small 64 KiB blocks so the (256,512)
    #     input runs an 8-step grid through both kernels.
    x = jax.random.uniform(k1, (256, 512), dtype=jnp.float32)
    y = centered_layer(x, min_elems=0, block_bytes=64 * 1024)
    jax.block_until_ready(y)
    y_ref = x - jnp.mean(x)
    assert y.shape == x.shape and y.dtype == x.dtype
    assert jnp.allclose(y, y_ref, atol=1e-5), "mismatch (multi-block path)"
    assert abs(float(jnp.mean(y))) < 1e-4, "output not centered"

    # (2) Single-block Pallas path with the default 4 MiB tile budget.
    y1 = centered_layer(x, min_elems=0)
    jax.block_until_ready(y1)
    assert jnp.allclose(y1, y_ref, atol=1e-5), "mismatch (single-block path)"

    # (3) 4-D input (flattened internally to a lane-dense (8, 256) view).
    x4 = jax.random.uniform(k2, (2, 4, 16, 16), dtype=jnp.float32)
    y4 = centered_layer(x4, min_elems=0)
    jax.block_until_ready(y4)
    assert y4.shape == x4.shape
    assert jnp.allclose(y4, x4 - jnp.mean(x4), atol=1e-5), "mismatch (4-D path)"

    # (4) Tiny input matching the module's own example (torch.rand(3, 2)):
    #     routed to the fused-XLA fallback with identical semantics.
    xs = jax.random.uniform(k3, (3, 2), dtype=jnp.float32)
    ys = centered_layer(xs)
    jax.block_until_ready(ys)
    assert jnp.allclose(ys, xs - jnp.mean(xs), atol=1e-6), "mismatch (fallback)"

    print("KERNEL_OK")
</pallas_src>

<mosaic_0001>
module attributes {stable_mosaic.version = 11 : i64} {
  func.func @_partial_sum_kernel(%arg0: i32, %arg1: memref<16x1024xf32, #tpu.memory_space<vmem>>, %arg2: memref<8x1024xf32, #tpu.memory_space<vmem>>) attributes {dimension_semantics = [#tpu.dimension_semantics<parallel>], iteration_bounds = array<i64: 8>, scalar_prefetch = 0 : i64, scratch_operands = 0 : i64, tpu.core_type = #tpu.core_type<tc>, window_params = [{transform_indices = @transform_0, window_bounds = array<i64: 16, 1024>}, {transform_indices = @transform_1, window_bounds = array<i64: 8, 1024>}]} {
    %c0 = arith.constant 0 : index
    %c0_0 = arith.constant 0 : index
    %0 = vector.load %arg1[%c0, %c0_0] : memref<16x1024xf32, #tpu.memory_space<vmem>>, vector<16x1024xf32>
    %1 = vector.shape_cast %0 : vector<16x1024xf32> to vector<2x8x1024xf32>
    %cst = arith.constant dense<0.000000e+00> : vector<8x1024xf32>
    %2 = vector.multi_reduction <add>, %1, %cst [0] : vector<2x8x1024xf32> to vector<8x1024xf32>
    %c0_1 = arith.constant 0 : index
    %c0_2 = arith.constant 0 : index
    %3 = vector.load %arg2[%c0_1, %c0_2] : memref<8x1024xf32, #tpu.memory_space<vmem>>, vector<8x1024xf32>
    tpu.vector_store %arg2[%c0_1, %c0_2], %2 {strides = array<i32>} : memref<8x1024xf32, #tpu.memory_space<vmem>>, vector<8x1024xf32>,
    return
  }
  func.func @transform_0(%arg0: i32) -> (i32, i32) {
    %c0_i32 = arith.constant 0 : i32
    %c0_i32_0 = arith.constant 0 : i32
    return %arg0, %c0_i32 : i32, i32
  }
  func.func @transform_1(%arg0: i32) -> (i32, i32) {
    %c0_i32 = arith.constant 0 : i32
    %c0_i32_0 = arith.constant 0 : i32
    return %arg0, %c0_i32 : i32, i32
  }
}

</mosaic_0001>

<llo_original>
// kernel: tpu_custom_call.1
$region0: #{tpu_custom_call.1}
  #allocation0 [shape = 'u32[]', space=smem, size = 0x4, offset = 0x4, fixed_abs, tag = 'smem constant byte address 0x4 - core index']
  #allocation1 [shape = 'u32[72,128]{1,0:T(1,128)}', space=vmem, size = 0x9000, scoped, tag = 'internal scratch']
  %s0 = inlined_call_operand.hbm [shape: f32[128,1024], index: 0, kind: input, shape index: {}]
  %s1 = inlined_call_operand.hbm [shape: f32[64,1024], index: 1, kind: output, shape index: {}]
  %s2 = sld [smem:[#allocation0]]
  $region41: #{tpu_custom_call.1} parent=0
    _
  %s4 = ssub.s32 1, %s2
  %s5 = scalar_select 0, %s4, %s2
  $region1: #{tpu_custom_call.1} parent=0
    #allocation2 [shape = 'u8[131072]{0}', space=vmem, size = 0x20000, scoped, tag = 'input window, operand 0']
    #allocation3 [shape = 's32[2]{0}', space=sflag, size = 0x8, scoped, tag = 'scoped memory for tpu_custom_call.1']
    #allocation4 [shape = 's32[2]{0}', space=sflag, size = 0x8, scoped, tag = 'scoped memory for tpu_custom_call.1']
    #allocation5 [shape = 'u8[65536]{0}', space=vmem, size = 0x10000, scoped, tag = 'output window, operand 0']
    %6 = vsyncpa [#allocation3], 0
    %s7 = scalar_lea.sflag [#allocation3], 1
    %8 = vsyncpa %s7, 0
    %9 = vsyncpa [#allocation4], 0
    %s10 = scalar_lea.sflag [#allocation4], 1
    %11 = vsyncpa %s10, 0
    loop: start=0, step=1, limit=10
    $region2: #{tpu_custom_call.1} parent=1 // loop_pre_header
      _
    $region3: #{tpu_custom_call.1} parent=1 // loop_header
      %s13 = sphi 0, %s17
      %p14 = scmp.ge.s32.totalorder %s13, 10
      %s23 = sphi 0, %s25
      %s26 = sphi 0, %s23
      %s27 = sphi 0, %s26
      %s43 = sphi 0, %s27
      %s49 = sphi 0, %s51
      %s52 = sphi 0, %s49
      %s53 = sphi 0, %s52
      %s69 = sphi 0, %s53
    $region4: #{tpu_custom_call.1} parent=1 // loop_header_branch
      %16 = sbr.rel (%p14) target = $region8
    $region5: #{tpu_custom_call.1} parent=1 // loop_body
      %s18 = ssub.s32 %s13, 1
      %s19 = ssub.s32 %s13, 2
      %s20 = sadd.s32 %s13, 1
      %s21 = ssub.s32 %s13, %s20
      %p22 = scmp.eq.s32.totalorder %s21, 0
      %s24 = sadd.s32 %s23, 1
      %s25 = scalar_select %p22, %s23, %s24
      %p28 = pneg %p22
      %p29 = scmp.eq.s32.totalorder %s13, 7
      %p30 = por %p28, %p29
      %p31 = scmp.ne.s32.totalorder %s23, %s26
      %p32 = scmp.eq.s32.totalorder %s13, 0
      %p33 = por %p31, %p32
      %p34 = scmp.ne.s32.totalorder %s23, %s26
      %p35 = scmp.eq.s32.totalorder %s18, 7
      %p36 = por %p34, %p35
      %p37 = scmp.ne.s32.totalorder %s26, %s27
      %p38 = scmp.eq.s32.totalorder %s18, 0
      %p39 = por %p37, %p38
      %p40 = scmp.ne.s32.totalorder %s26, %s27
      %p41 = scmp.eq.s32.totalorder %s19, 7
      %p42 = por %p40, %p41
      %p44 = scmp.ne.s32.totalorder %s27, %s43
      %p45 = scmp.eq.s32.totalorder %s19, 0
      %p46 = por %p44, %p45
      %s47 = ssub.s32 %s13, %s20
      %p48 = scmp.eq.s32.totalorder %s47, 0
      %s50 = sadd.s32 %s49, 1
      %s51 = scalar_select %p48, %s49, %s50
      %p54 = pneg %p48
      %p55 = scmp.eq.s32.totalorder %s13, 7
      %p56 = por %p54, %p55
      %p57 = scmp.ne.s32.totalorder %s49, %s52
      %p58 = scmp.eq.s32.totalorder %s13, 0
      %p59 = por %p57, %p58
      %p60 = scmp.ne.s32.totalorder %s49, %s52
      %p61 = scmp.eq.s32.totalorder %s18, 7
      %p62 = por %p60, %p61
      %p63 = scmp.ne.s32.totalorder %s52, %s53
      %p64 = scmp.eq.s32.totalorder %s18, 0
      %p65 = por %p63, %p64
      %p66 = scmp.ne.s32.totalorder %s52, %s53
      %p67 = scmp.eq.s32.totalorder %s19, 7
      %p68 = por %p66, %p67
      %p70 = scmp.ne.s32.totalorder %s53, %s69
      %p71 = scmp.eq.s32.totalorder %s19, 0
      %p72 = por %p70, %p71
      %p73 = scmp.le.s32.totalorder 1, %s13
      %p74 = scmp.lt.s32.totalorder %s13, 9
      %p75 = pnand %p73, %p74
      %p76 = pneg %p75
      // Predicated region
      $region9: #{tpu_custom_call.1} parent=5 // pred_check
        _
      $region10: #{tpu_custom_call.1} parent=5 // pred_check_branch
        %78 = sbr.rel (%p75) target = $region12
      $region11: #{tpu_custom_call.1} parent=5 // pred_region
        %s79 = ssub.s32 %s13, 1
      $region12: #{tpu_custom_call.1} parent=5 // pred_fallthru
        _
      %p80 = scmp.lt.s32.totalorder %s13, 8
      // Predicated region
      $region13: #{tpu_custom_call.1} parent=5 // pred_check
        %p81 = pneg %p80
      $region14: #{tpu_custom_call.1} parent=5 // pred_check_branch
        %83 = sbr.rel (%p81) target = $region16
      $region15: #{tpu_custom_call.1} parent=5 // pred_region
        // Predicated region
        $region17: #{tpu_custom_call.1} parent=15 // pred_check
          %p84 = pneg %p33
        $region18: #{tpu_custom_call.1} parent=15 // pred_check_branch
          %86 = sbr.rel (%p84) target = $region20
        $region19: #{tpu_custom_call.1} parent=15 // pred_region
          %s87 = sand.u32 %s23, 1
          %s88 = scalar_lea.sflag [#allocation3], %s87
          %s89 = sand.u32 %s23, 1
          %s90 = smul.addr %s89, 128
          %s91 = scalar_lea.vmem [#allocation2], %s90
          %s92 = smul.u32 2, %s13
          %94 = vsyncadd %s88, 0
          %s95 = smul.addr %s92, 8
          %s96 = smul.addr %s95, 8
          %s97 = scalar_lea.hbm %s0, %s96
          %s98 = sshll.u32 %s97, 4
          %s99 = int_to_ptr.hbm [resolvable:$true] %s98
          %s100 = sshll.u32 %s91, 4
          %s101 = int_to_ptr.vmem [resolvable:$true] %s100
          %106 = dma.hbm_to_vmem [thread:$0]  %s99, 2048, %s101, %s88, 1024, 1024, 64
        $region20: #{tpu_custom_call.1} parent=15 // pred_fallthru
          _
      $region16: #{tpu_custom_call.1} parent=5 // pred_fallthru
        _
      %p107 = scmp.le.s32.totalorder 1, %s13
      %p108 = scmp.lt.s32.totalorder %s13, 9
      %p109 = pnand %p107, %p108
      %p110 = pneg %p109
      // Predicated region
      $region21: #{tpu_custom_call.1} parent=5 // pred_check
        _
      $region22: #{tpu_custom_call.1} parent=5 // pred_check_branch
        %112 = sbr.rel (%p109) target = $region24
      $region23: #{tpu_custom_call.1} parent=5 // pred_region
        %s113 = ssub.s32 %s13, 1
        %s114 = sand.u32 %s26, 1
        %s115 = scalar_lea.sflag [#allocation3], %s114
        %s116 = sand.u32 %s26, 1
        %s117 = smul.addr %s116, 128
        %s118 = scalar_lea.vmem [#allocation2], %s117
        // Predicated region
        $region25: #{tpu_custom_call.1} parent=23 // pred_check
          %p119 = pneg %p39
        $region26: #{tpu_custom_call.1} parent=23 // pred_check_branch
          %121 = sbr.rel (%p119) target = $region28
        $region27: #{tpu_custom_call.1} parent=23 // pred_region
          %123 = dma.done %s115, 2048
        $region28: #{tpu_custom_call.1} parent=23 // pred_fallthru
          _
        %s124 = sand.u32 %s26, 1
        %s125 = scalar_lea.sflag [#allocation3], %s124
        %s126 = sand.u32 %s26, 1
        %s127 = smul.addr %s126, 128
        %s128 = scalar_lea.vmem [#allocation2], %s127
        %p129 = pneg %p39
        %p130 = pneg %p36
        %p131 = pneg %p65
        %p132 = pneg %p62
        %s133 = sand.u32 %s52, 1
        %s134 = scalar_lea.sflag [#allocation4], %s133
        %s135 = sand.u32 %s52, 1
        %s136 = smul.addr %s135, 64
        %s137 = scalar_lea.vmem [#allocation5], %s136
        %s138 = smul.u32 2, %s18
        %v139 = vld [vmem:[%s118] sm:$0xff]
        %v140 = vld [vmem:[%s118 + $0x8] sm:$0xff]
        %v141 = vld [vmem:[%s118 + $0x10] sm:$0xff]
        %v142 = vld [vmem:[%s118 + $0x18] sm:$0xff]
        %v143 = vld [vmem:[%s118 + $0x20] sm:$0xff]
        %v144 = vld [vmem:[%s118 + $0x28] sm:$0xff]
        %v145 = vld [vmem:[%s118 + $0x30] sm:$0xff]
        %v146 = vld [vmem:[%s118 + $0x38] sm:$0xff]
        %v147 = vld [vmem:[%s118 + $0x40] sm:$0xff]
        %v148 = vld [vmem:[%s118 + $0x48] sm:$0xff]
        %v149 = vld [vmem:[%s118 + $0x50] sm:$0xff]
        %v150 = vld [vmem:[%s118 + $0x58] sm:$0xff]
        %v151 = vld [vmem:[%s118 + $0x60] sm:$0xff]
        %v152 = vld [vmem:[%s118 + $0x68] sm:$0xff]
        %v153 = vld [vmem:[%s118 + $0x70] sm:$0xff]
        %v154 = vld [vmem:[%s118 + $0x78] sm:$0xff]
        %v155 = vadd.f32 %v139, %v147
        %v156 = vadd.f32 %v140, %v148
        %v157 = vadd.f32 %v141, %v149
        %v158 = vadd.f32 %v142, %v150
        %v159 = vadd.f32 %v143, %v151
        %v160 = vadd.f32 %v144, %v152
        %v161 = vadd.f32 %v145, %v153
        %v162 = vadd.f32 %v146, %v154
        %163 = vst [vmem:[%s137] sm:$0xff] %v155
        %164 = vst [vmem:[%s137 + $0x8] sm:$0xff] %v156
        %165 = vst [vmem:[%s137 + $0x10] sm:$0xff] %v157
        %166 = vst [vmem:[%s137 + $0x18] sm:$0xff] %v158
        %167 = vst [vmem:[%s137 + $0x20] sm:$0xff] %v159
        %168 = vst [vmem:[%s137 + $0x28] sm:$0xff] %v160
        %169 = vst [vmem:[%s137 + $0x30] sm:$0xff] %v161
        %170 = vst [vmem:[%s137 + $0x38] sm:$0xff] %v162
        %s171 = sand.u32 %s52, 1
        %s172 = scalar_lea.sflag [#allocation4], %s171
        %s173 = sand.u32 %s52, 1
        %s174 = smul.addr %s173, 64
        %s175 = scalar_lea.vmem [#allocation5], %s174
        // Predicated region
        $region29: #{tpu_custom_call.1} parent=23 // pred_check
          %p176 = pneg %p62
        $region30: #{tpu_custom_call.1} parent=23 // pred_check_branch
          %178 = sbr.rel (%p176) target = $region32
        $region31: #{tpu_custom_call.1} parent=23 // pred_region
          %180 = vsyncadd %s172, 0
          %s181 = smul.addr %s18, 8
          %s182 = smul.addr %s181, 8
          %s183 = scalar_lea.hbm %s1, %s182
          %s185 = sshll.u32 %s175, 4
          %s186 = int_to_ptr.vmem [resolvable:$true] %s185
          %s187 = sshll.u32 %s183, 4
          %s188 = int_to_ptr.hbm [resolvable:$true] %s187
          %190 = dma.vmem_to_hbm [thread:$0]  %s186, 1024, %s188, %s172
        $region32: #{tpu_custom_call.1} parent=23 // pred_fallthru
          _
      $region24: #{tpu_custom_call.1} parent=5 // pred_fallthru
        _
      %p191 = scmp.le.s32.totalorder 2, %s13
      // Predicated region
      $region33: #{tpu_custom_call.1} parent=5 // pred_check
        %p192 = pneg %p191
      $region34: #{tpu_custom_call.1} parent=5 // pred_check_branch
        %194 = sbr.rel (%p192) target = $region36
      $region35: #{tpu_custom_call.1} parent=5 // pred_region
        %s195 = ssub.s32 %s13, 2
        // Predicated region
        $region37: #{tpu_custom_call.1} parent=35 // pred_check
          %p196 = pneg %p68
        $region38: #{tpu_custom_call.1} parent=35 // pred_check_branch
          %198 = sbr.rel (%p196) target = $region40
        $region39: #{tpu_custom_call.1} parent=35 // pred_region
          %s199 = sand.u32 %s53, 1
          %s200 = scalar_lea.sflag [#allocation4], %s199
          %s201 = sand.u32 %s53, 1
          %s202 = smul.addr %s201, 64
          %s203 = scalar_lea.vmem [#allocation5], %s202
          %205 = dma.done %s200, 1024
        $region40: #{tpu_custom_call.1} parent=35 // pred_fallthru
          _
      $region36: #{tpu_custom_call.1} parent=5 // pred_fallthru
        _
    $region6: #{tpu_custom_call.1} parent=1 // loop_footer
      %s17 = sadd.s32 1, %s13
    $region7: #{tpu_custom_call.1} parent=1 // loop_footer_branch
      %12 = sbr.rel target = $region3
    $region8: #{tpu_custom_call.1} parent=1 // loop_exit
      _
    %206 = vsyncpa [#allocation3], 1
    %s207 = scalar_lea.sflag [#allocation3], 1
    %208 = vsyncpa %s207, 1
    %209 = vsyncpa [#allocation4], 1
    %s210 = scalar_lea.sflag [#allocation4], 1
    %211 = vsyncpa %s210, 1

</llo_original>
